<compile_context>
chip_gen: v7x
topology: tpu7x:2x2x1
jax: 0.10.0
libtpu: 0.0.40
codegen_flags: <defaults>
</compile_context>

<pallas_src>
import functools

import jax
import jax.numpy as jnp
from jax.experimental import pallas as pl
from jax.experimental.pallas import tpu as pltpu

LANES = 128
_NUM_SUMS = 4  # [dice intersection, sum(sigmoid(t)), sum(x), sum(BCE)]


def _make_kernel(n_valid: int, tile_rows: int, mask_last: bool):
    """Per-block partial sums over the flattened arrays:
       [0] sum(sigmoid(t) * x)        (dice intersection; note the arg swap)
       [1] sum(sigmoid(t))            (dice denominator part)
       [2] sum(x)                     (dice denominator part)
       [3] sum(BCE_with_logits(x, t)) (un-averaged BCE)
    """

    def _partials(x, t, mask):
        x = x.astype(jnp.float32)  # "inputs"  of DiceBCELoss (logits)
        t = t.astype(jnp.float32)  # "targets" of DiceBCELoss (labels)

        # sigmoid applied to *targets* (argument swap in the PyTorch module).
        sig_t = 1.0 / (1.0 + jnp.exp(-t))
        inter = sig_t * x
        # Stable BCE-with-logits: max(x,0) - x*t + log1p(exp(-|x|)).
        # TODO(synk): PyTorch clamps each log term at -100; only differs for
        # fully saturated probabilities.
        bce = jnp.maximum(x, 0.0) - x * t + jnp.log1p(jnp.exp(-jnp.abs(x)))

        vals = (inter, sig_t, x, bce)
        if mask is not None:
            zero = jnp.zeros_like(x)
            vals = tuple(jnp.where(mask, v, zero) for v in vals)

        # One (1, 128) lane-wise partial per quantity -> (4, 128) output block.
        return jnp.concatenate(
            [jnp.sum(v, axis=0, keepdims=True) for v in vals], axis=0)

    def kernel(x_ref, t_ref, out_ref):
        i = pl.program_id(0)

        if mask_last:
            last = pl.num_programs(0) - 1

            @pl.when(i != last)
            def _():  # fast path: no iota / compare / select
                out_ref[0] = _partials(x_ref[...], t_ref[...], None)

            @pl.when(i == last)
            def _():  # masked tail path (only on the last block)
                shape = (tile_rows, LANES)
                row = jax.lax.broadcasted_iota(jnp.int32, shape, 0)
                col = jax.lax.broadcasted_iota(jnp.int32, shape, 1)
                flat = (i * tile_rows + row) * LANES + col
                out_ref[0] = _partials(x_ref[...], t_ref[...], flat < n_valid)
        else:
            out_ref[0] = _partials(x_ref[...], t_ref[...], None)

    return kernel


def _row_multiple(dtype) -> int:
    """Sublane multiple for packed dtypes: f32 -> 8, bf16/f16 -> 16, 1B -> 32."""
    itemsize = jnp.dtype(dtype).itemsize
    return 8 * max(1, 4 // itemsize)


@functools.partial(jax.jit, static_argnames=("smooth", "tile_rows"))
def dice_bce_loss(inputs, targets, smooth: float = 1.0, tile_rows: int = 1024):
    x = jnp.ravel(inputs)
    t = jnp.ravel(targets)
    # Keep native float dtypes (less HBM traffic); cast to f32 inside the kernel.
    if not jnp.issubdtype(x.dtype, jnp.floating):
        x = x.astype(jnp.float32)
    if not jnp.issubdtype(t.dtype, jnp.floating):
        t = t.astype(jnp.float32)
    n = x.shape[0]

    row_mult = max(_row_multiple(x.dtype), _row_multiple(t.dtype))
    chunk = row_mult * LANES
    n_pad = ((n + chunk - 1) // chunk) * chunk
    if n_pad != n:  # pad (and copy) only when strictly necessary
        x = jnp.pad(x, (0, n_pad - n))
        t = jnp.pad(t, (0, n_pad - n))
    rows = n_pad // LANES

    tile = max(tile_rows - tile_rows % row_mult, row_mult)
    tile = min(tile, rows)                 # never larger than the array
    n_blocks = pl.cdiv(rows, tile)
    mask_last = n < n_blocks * tile * LANES  # ragged/padded tail present?

    x2 = x.reshape(rows, LANES)
    t2 = t.reshape(rows, LANES)

    parts = pl.pallas_call(
        _make_kernel(n, tile, mask_last),
        out_shape=jax.ShapeDtypeStruct((n_blocks, _NUM_SUMS, LANES), jnp.float32),
        grid_spec=pltpu.PrefetchScalarGridSpec(
            num_scalar_prefetch=0,
            grid=(n_blocks,),
            in_specs=[
                pl.BlockSpec((tile, LANES), lambda i: (i, 0)),
                pl.BlockSpec((tile, LANES), lambda i: (i, 0)),
            ],
            out_specs=pl.BlockSpec((1, _NUM_SUMS, LANES), lambda i: (i, 0, 0)),
        ),
        compiler_params=pltpu.CompilerParams(
            dimension_semantics=("parallel",)),
    )(x2, t2)

    # Tiny final reduction in plain JAX: (n_blocks, 4, 128) -> (4,)
    sums = jnp.sum(parts, axis=(0, 2))
    inter, s_sig_t, s_x, s_bce = sums[0], sums[1], sums[2], sums[3]

    dice = 1.0 - (2.0 * inter + smooth) / (s_sig_t + s_x + smooth)
    bce = s_bce / n
    return dice + bce


def _reference_loss(inputs, targets, smooth: float = 1.0):
    """Pure-JAX reference matching the PyTorch module (incl. the arg swap)."""
    x = jnp.ravel(inputs).astype(jnp.float32)
    t = jnp.ravel(targets).astype(jnp.float32)
    sig_t = jax.nn.sigmoid(t)
    inter = jnp.sum(sig_t * x)
    dice = 1.0 - (2.0 * inter + smooth) / (jnp.sum(sig_t) + jnp.sum(x) + smooth)
    p = jax.nn.sigmoid(x)
    bce = jnp.mean(-(t * jnp.log(p) + (1.0 - t) * jnp.log1p(-p)))
    return dice + bce


if __name__ == "__main__":
    key = jax.random.PRNGKey(0)
    k1, k2, k3, k4 = jax.random.split(key, 4)

    # Typical segmentation-loss inputs: logits + binary mask, NCHW.
    inputs = jax.random.normal(k1, (2, 4, 16, 16), dtype=jnp.float32)
    targets = (jax.random.uniform(k2, (2, 4, 16, 16)) > 0.5).astype(jnp.float32)

    loss = jax.block_until_ready(dice_bce_loss(inputs, targets, smooth=1.0))
    ref = jax.block_until_ready(_reference_loss(inputs, targets, smooth=1.0))
    assert jnp.allclose(loss, ref, atol=1e-5, rtol=1e-5), (loss, ref)

    # Also exercise the ragged-tail / masked path (size not a multiple of 128).
    inputs2 = jax.random.normal(k3, (3, 5, 7), dtype=jnp.float32)
    targets2 = (jax.random.uniform(k4, (3, 5, 7)) > 0.5).astype(jnp.float32)
    loss2 = jax.block_until_ready(dice_bce_loss(inputs2, targets2, smooth=1.0))
    ref2 = jax.block_until_ready(_reference_loss(inputs2, targets2, smooth=1.0))
    assert jnp.allclose(loss2, ref2, atol=1e-5, rtol=1e-5), (loss2, ref2)

    print("KERNEL_OK")
</pallas_src>

<mosaic_0001>
module attributes {stable_mosaic.version = 11 : i64} {
  func.func @kernel(%arg0: i32, %arg1: memref<16x128xf32, #tpu.memory_space<vmem>>, %arg2: memref<16x128xf32, #tpu.memory_space<vmem>>, %arg3: memref<1x4x128xf32, #tpu.memory_space<vmem>>) attributes {dimension_semantics = [#tpu.dimension_semantics<parallel>], iteration_bounds = array<i64: 1>, scalar_prefetch = 0 : i64, scratch_operands = 0 : i64, tpu.core_type = #tpu.core_type<tc>, window_params = [{transform_indices = @transform_0, window_bounds = array<i64: 16, 128>}, {transform_indices = @transform_1, window_bounds = array<i64: 16, 128>}, {transform_indices = @transform_2, window_bounds = array<i64: 1, 4, 128>}]} {
    %c0 = arith.constant 0 : index
    %c0_0 = arith.constant 0 : index
    %0 = vector.load %arg1[%c0, %c0_0] : memref<16x128xf32, #tpu.memory_space<vmem>>, vector<16x128xf32>
    %c0_1 = arith.constant 0 : index
    %c0_2 = arith.constant 0 : index
    %1 = vector.load %arg2[%c0_1, %c0_2] : memref<16x128xf32, #tpu.memory_space<vmem>>, vector<16x128xf32>
    %cst = arith.constant 0.000000e+00 : f32
    %2 = vector.broadcast %cst : f32 to vector<16x128xf32>
    %3 = arith.subf %2, %1 : vector<16x128xf32>
    %4 = math.exp %3 : vector<16x128xf32>
    %cst_3 = arith.constant 1.000000e+00 : f32
    %5 = vector.broadcast %cst_3 : f32 to vector<16x128xf32>
    %6 = arith.addf %5, %4 : vector<16x128xf32>
    %cst_4 = arith.constant 1.000000e+00 : f32
    %7 = vector.broadcast %cst_4 : f32 to vector<16x128xf32>
    %8 = arith.divf %7, %6 : vector<16x128xf32>
    %9 = arith.mulf %8, %0 : vector<16x128xf32>
    %cst_5 = arith.constant 0.000000e+00 : f32
    %10 = vector.broadcast %cst_5 : f32 to vector<16x128xf32>
    %11 = arith.maximumf %0, %10 : vector<16x128xf32>
    %12 = arith.mulf %0, %1 : vector<16x128xf32>
    %13 = arith.subf %11, %12 : vector<16x128xf32>
    %14 = math.absf %0 : vector<16x128xf32>
    %cst_6 = arith.constant 0.000000e+00 : f32
    %15 = vector.broadcast %cst_6 : f32 to vector<16x128xf32>
    %16 = arith.subf %15, %14 : vector<16x128xf32>
    %17 = math.exp %16 : vector<16x128xf32>
    %18 = math.log1p %17 : vector<16x128xf32>
    %19 = arith.addf %13, %18 : vector<16x128xf32>
    %cst_7 = arith.constant dense<0.000000e+00> : vector<128xf32>
    %20 = vector.multi_reduction <add>, %9, %cst_7 [0] : vector<16x128xf32> to vector<128xf32>
    %21 = vector.shape_cast %20 : vector<128xf32> to vector<1x128xf32>
    %cst_8 = arith.constant dense<0.000000e+00> : vector<128xf32>
    %22 = vector.multi_reduction <add>, %8, %cst_8 [0] : vector<16x128xf32> to vector<128xf32>
    %23 = vector.shape_cast %22 : vector<128xf32> to vector<1x128xf32>
    %cst_9 = arith.constant dense<0.000000e+00> : vector<128xf32>
    %24 = vector.multi_reduction <add>, %0, %cst_9 [0] : vector<16x128xf32> to vector<128xf32>
    %25 = vector.shape_cast %24 : vector<128xf32> to vector<1x128xf32>
    %cst_10 = arith.constant dense<0.000000e+00> : vector<128xf32>
    %26 = vector.multi_reduction <add>, %19, %cst_10 [0] : vector<16x128xf32> to vector<128xf32>
    %27 = vector.shape_cast %26 : vector<128xf32> to vector<1x128xf32>
    %28 = tpu.concatenate %21, %23, %25, %27 in 0 : vector<1x128xf32>, vector<1x128xf32>, vector<1x128xf32>, vector<1x128xf32> -> vector<4x128xf32>
    %c0_11 = arith.constant 0 : index
    %c0_12 = arith.constant 0 : index
    %c0_13 = arith.constant 0 : index
    %29 = vector.load %arg3[%c0_11, %c0_12, %c0_13] : memref<1x4x128xf32, #tpu.memory_space<vmem>>, vector<1x4x128xf32>
    %30 = vector.shape_cast %29 : vector<1x4x128xf32> to vector<4x128xf32>
    %31 = vector.shape_cast %28 : vector<4x128xf32> to vector<1x4x128xf32>
    tpu.vector_store %arg3[%c0_11, %c0_12, %c0_13], %31 {strides = array<i32>} : memref<1x4x128xf32, #tpu.memory_space<vmem>>, vector<1x4x128xf32>,
    return
  }
  func.func @transform_0(%arg0: i32) -> (i32, i32) {
    %c0_i32 = arith.constant 0 : i32
    %c0_i32_0 = arith.constant 0 : i32
    return %arg0, %c0_i32 : i32, i32
  }
  func.func @transform_1(%arg0: i32) -> (i32, i32) {
    %c0_i32 = arith.constant 0 : i32
    %c0_i32_0 = arith.constant 0 : i32
    return %arg0, %c0_i32 : i32, i32
  }
  func.func @transform_2(%arg0: i32) -> (i32, i32, i32) {
    %c0_i32 = arith.constant 0 : i32
    %c0_i32_0 = arith.constant 0 : i32
    %c0_i32_1 = arith.constant 0 : i32
    return %arg0, %c0_i32, %c0_i32_0 : i32, i32, i32
  }
}

</mosaic_0001>

<llo_original>
// kernel: dice_bce_loss.1
$region0: #{dice_bce_loss.1}
  #allocation0 [shape = 'u32[]', space=smem, size = 0x4, offset = 0x4, fixed_abs, tag = 'smem constant byte address 0x4 - core index']
  #allocation1 [shape = 'u32[144,128]{1,0:T(1,128)}', space=vmem, size = 0x12000, scoped, tag = 'internal scratch']
  %s0 = inlined_call_operand.vmem [shape: f32[16,128], index: 0, kind: input, shape index: {}]
  %s1 = inlined_call_operand.vmem [shape: f32[16,128], index: 1, kind: input, shape index: {}]
  %s2 = inlined_call_operand.vmem [shape: f32[1,4,128], index: 2, kind: output, shape index: {}]
  %s3 = sld [smem:[#allocation0]]
  $region18: #{dice_bce_loss.1} parent=0
    _
  %s5 = ssub.s32 1, %s3
  %s6 = scalar_select 0, %s5, %s3
  // Predicated region
  $region2: #{dice_bce_loss.1} parent=0 // pred_check
    _
  $region3: #{dice_bce_loss.1} parent=0 // pred_check_branch
    %8 = sbr.rel (0) target = $region5
  $region4: #{dice_bce_loss.1} parent=0 // pred_region
    _
  $region5: #{dice_bce_loss.1} parent=0 // pred_fallthru
    _
  // Predicated region
  $region6: #{dice_bce_loss.1} parent=0 // pred_check
    _
  $region7: #{dice_bce_loss.1} parent=0 // pred_check_branch
    %10 = sbr.rel (0) target = $region9
  $region8: #{dice_bce_loss.1} parent=0 // pred_region
    _
  $region9: #{dice_bce_loss.1} parent=0 // pred_fallthru
    _
  %v11 = vld [vmem:[%s0] sm:$0xff]
  %v12 = vld [vmem:[%s0 + $0x8] sm:$0xff]
  %v13 = vld [vmem:[%s1] sm:$0xff]
  %v14 = vld [vmem:[%s1 + $0x8] sm:$0xff]
  %v15 = vsub.f32 0.0, %v13
  %v16 = vsub.f32 0.0, %v14
  %v17 = vmul.f32 %v15, 1.442695
  %v18 = vpow.pop %v17
  %v19 = vmul.f32 %v16, 1.442695
  %v20 = vpow.pop %v19
  %v21 = vadd.f32 %v18, 1.0
  %v22 = vadd.f32 %v20, 1.0
  %v23 = vrcp.pop %v21
  %v24 = vmul.f32 1.0, %v23
  %v25 = vrcp.pop %v22
  %v26 = vmul.f32 1.0, %v25
  %v27 = vmul.f32 %v24, %v11
  %v28 = vmul.f32 %v26, %v12
  %v29 = vmax.f32 %v11, 0.0
  %v30 = vmax.f32 %v12, 0.0
  %v31 = vmul.f32 %v11, %v13
  %v32 = vmul.f32 %v12, %v14
  %v33 = vsub.f32 %v29, %v31
  %v34 = vsub.f32 %v30, %v32
  %v35 = vand.u32 2147483647, %v11
  %v36 = vand.u32 2147483647, %v12
  %v37 = vsub.f32 0.0, %v35
  %v38 = vsub.f32 0.0, %v36
  %v39 = vmul.f32 %v37, 1.442695
  %v40 = vpow.pop %v39
  %v41 = vmul.f32 %v38, 1.442695
  %v42 = vpow.pop %v41
  %v43 = vadd.f32 %v40, 1.0
  %v44 = vlog2.pop %v43
  %v45 = vmul.f32 %v44, 0.6931472
  %v46 = vmul.f32 -0.5, %v40
  %v47 = vadd.f32 %v46, 1.0
  %v48 = vmul.f32 %v47, %v40
  %v49 = vand.u32 2147483647, %v40
  %vm50 = vcmp.lt.f32.partialorder %v49, 0.0004427343
  %v51 = vsel %vm50, %v48, %v45
  %v52 = vadd.f32 %v42, 1.0
  %v53 = vlog2.pop %v52
  %v54 = vmul.f32 %v53, 0.6931472
  %v55 = vmul.f32 -0.5, %v42
  %v56 = vadd.f32 %v55, 1.0
  %v57 = vmul.f32 %v56, %v42
  %v58 = vand.u32 2147483647, %v42
  %vm59 = vcmp.lt.f32.partialorder %v58, 0.0004427343
  %v60 = vsel %vm59, %v57, %v54
  %v61 = vadd.f32 %v33, %v51
  %v62 = vadd.f32 %v34, %v60
  %v63 = vadd.f32 %v27, %v28
  %v64 = vrot.slane %v63, 4
  %v65 = vadd.f32 %v63, %v64
  %v66 = vrot.slane %v65, 2
  %v67 = vadd.f32 %v65, %v66
  %v68 = vrot.slane %v67, 1
  %v69 = vadd.f32 %v67, %v68
  %v70 = vadd.f32 %v24, %v26
  %v71 = vrot.slane %v70, 4
  %v72 = vadd.f32 %v70, %v71
  %v73 = vrot.slane %v72, 2
  %v74 = vadd.f32 %v72, %v73
  %v75 = vrot.slane %v74, 1
  %v76 = vadd.f32 %v74, %v75
  %v77 = vadd.f32 %v11, %v12
  %v78 = vrot.slane %v77, 4
  %v79 = vadd.f32 %v77, %v78
  %v80 = vrot.slane %v79, 2
  %v81 = vadd.f32 %v79, %v80
  %v82 = vrot.slane %v81, 1
  %v83 = vadd.f32 %v81, %v82
  %v84 = vadd.f32 %v61, %v62
  %v85 = vrot.slane %v84, 4
  %v86 = vadd.f32 %v84, %v85
  %v87 = vrot.slane %v86, 2
  %v88 = vadd.f32 %v86, %v87
  %v89 = vrot.slane %v88, 1
  %v90 = vadd.f32 %v88, %v89
  %vm91 = vcmask 1040384
  %v92 = vsel %vm91, %v69, %v76
  %vm93 = vcmask 1041408
  %v94 = vsel %vm93, %v92, %v83
  %vm95 = vcmask 1042432
  %v96 = vsel %vm95, %v94, %v90
  %97 = vst [vmem:[%s2] sm:$0xf] %v96
  // Predicated region
  $region10: #{dice_bce_loss.1} parent=0 // pred_check
    _
  $region11: #{dice_bce_loss.1} parent=0 // pred_check_branch
    %99 = sbr.rel (0) target = $region13
  $region12: #{dice_bce_loss.1} parent=0 // pred_region
    _
  $region13: #{dice_bce_loss.1} parent=0 // pred_fallthru
    _
  // Predicated region
  $region14: #{dice_bce_loss.1} parent=0 // pred_check
    _
  $region15: #{dice_bce_loss.1} parent=0 // pred_check_branch
    %101 = sbr.rel (0) target = $region17
  $region16: #{dice_bce_loss.1} parent=0 // pred_region
    _
  $region17: #{dice_bce_loss.1} parent=0 // pred_fallthru
    _

</llo_original>
